<compile_context>
chip_gen: v7x
topology: tpu7x:2x2x1
jax: 0.10.0
libtpu: 0.0.40
codegen_flags: <defaults>
</compile_context>

<pallas_src>
import functools

import jax
import jax.numpy as jnp
import numpy as np
from jax import lax
from jax.experimental import pallas as pl
from jax.experimental.pallas import tpu as pltpu

COORD_PAD = 8   # xyz (3) padded to one f32 sublane tile


# --------------------------------------------------------------------------
# Stage 1: MLP head  ->  conformer_hat slab (n_pad, 8)
# --------------------------------------------------------------------------
def _mlp_head_kernel(n_valid, hx_ref, w1_ref, b1_ref, w2_ref, b2_ref, chat_ref):
    f32 = jnp.float32
    h = jnp.dot(hx_ref[...], w1_ref[...], preferred_element_type=f32) + b1_ref[...]
    h = jnp.maximum(h, 0.0)
    chat = jnp.dot(h, w2_ref[...], preferred_element_type=f32) + b2_ref[...]
    # zero the padding rows so they contribute nothing downstream
    tr = chat_ref.shape[0]
    row = pl.program_id(0) * tr + lax.broadcasted_iota(jnp.int32, chat.shape, 0)
    chat_ref[...] = jnp.where(row < n_valid, chat, 0.0)


# --------------------------------------------------------------------------
# Stage 2: tiled masked cdist MAE / MSE partial sums
# --------------------------------------------------------------------------
def _dist_loss_kernel(num_graphs,
                      tmin_ref, tmax_ref,            # scalar prefetch (SMEM)
                      cr_ref, hr_ref,                # (T, 8)  row coords
                      ct_ref, ht_ref,                # (8, T)  col coords (transposed)
                      gid_r_ref, gid_c_ref,          # (T,1) / (1,T) graph ids
                      out_ref):                      # (1, 8, 128) partial sums
    f32 = jnp.float32
    ri = pl.program_id(0)
    ci = pl.program_id(1)

    # output block is resident across the inner (ci) axis -> accumulator
    @pl.when(ci == 0)
    def _():
        out_ref[...] = jnp.zeros_like(out_ref)

    rmin = tmin_ref[ri]
    rmax = tmax_ref[ri]
    cmin = tmin_ref[ci]
    cmax = tmax_ref[ci]
    # upper-triangular tiles only (symmetry, 2x weight off-diagonal), only when
    # the row/col graph-id intervals overlap (block-diagonal mask), and only
    # when the tile contains at least one real (non padding) node.
    do_work = ((ci >= ri)
               & (rmax >= cmin) & (cmax >= rmin)
               & (rmin < num_graphs) & (cmin < num_graphs))

    @pl.when(do_work)
    def _():
        def tile_dist(xr, xt):
            sq_r = jnp.sum(xr * xr, axis=1, keepdims=True)        # (T, 1)
            sq_c = jnp.sum(xt * xt, axis=0, keepdims=True)        # (1, T)
            gram = jnp.dot(xr, xt, preferred_element_type=f32)    # MXU, K=8
            d2 = jnp.maximum(sq_r + sq_c - 2.0 * gram, 0.0)
            return jnp.sqrt(d2)

        d = tile_dist(cr_ref[...], ct_ref[...])
        dh = tile_dist(hr_ref[...], ht_ref[...])
        same = gid_r_ref[...] == gid_c_ref[...]                    # (T, T)
        diff = jnp.where(same, d - dh, 0.0)

        wgt = jnp.where(ri == ci, 1.0, 2.0)
        mae_part = wgt * jnp.sum(jnp.abs(diff))
        mse_part = wgt * jnp.sum(diff * diff)

        lane = lax.broadcasted_iota(jnp.int32, out_ref.shape, 2)
        out_ref[...] += (jnp.where(lane == 0, mae_part, 0.0)
                         + jnp.where(lane == 1, mse_part, 0.0))


# --------------------------------------------------------------------------
# Wrapper
# --------------------------------------------------------------------------
def gnn_conformer_prediction_head(conformer, hidden_X, batch, params, num_graphs,
                                  *, tile=256):
    """Forward of GNNConformerPredictionHead (returns the same dict as torch).

    Assumes graph ids lie in [0, num_graphs) and every graph is non-empty
    (same assumption as the PyTorch module).
    """
    f32 = jnp.float32
    w1, b1, w2, b2 = params
    N, H = hidden_X.shape
    H3 = w1.shape[1]

    assert tile % 128 == 0, "tile must be a multiple of 128"
    n_pad = ((N + tile - 1) // tile) * tile
    nt = n_pad // tile
    pad = n_pad - N

    # ---- padded operands ----------------------------------------------------
    hx = jnp.zeros((n_pad, H), f32).at[:N].set(hidden_X.astype(f32))
    w1f = w1.astype(f32)
    b1r = b1.astype(f32).reshape(1, H3)
    w2p = jnp.zeros((H3, COORD_PAD), f32).at[:, :3].set(w2.astype(f32))
    b2p = jnp.zeros((1, COORD_PAD), f32).at[0, :3].set(b2.astype(f32))

    # ---- Stage 1: MLP head -> conformer_hat slab ----------------------------
    mlp_cost = pl.CostEstimate(
        flops=2 * n_pad * H * H3 + 2 * n_pad * H3 * COORD_PAD,
        transcendentals=0,
        bytes_accessed=4 * (n_pad * H + H * H3 + H3 * COORD_PAD
                            + n_pad * COORD_PAD))
    chat_pad = pl.pallas_call(
        functools.partial(_mlp_head_kernel, N),
        out_shape=jax.ShapeDtypeStruct((n_pad, COORD_PAD), f32),
        grid_spec=pltpu.PrefetchScalarGridSpec(
            num_scalar_prefetch=0,
            grid=(nt,),
            in_specs=[
                pl.BlockSpec((tile, H), lambda r: (r, 0)),
                pl.BlockSpec((H, H3), lambda r: (0, 0)),
                pl.BlockSpec((1, H3), lambda r: (0, 0)),
                pl.BlockSpec((H3, COORD_PAD), lambda r: (0, 0)),
                pl.BlockSpec((1, COORD_PAD), lambda r: (0, 0)),
            ],
            out_specs=pl.BlockSpec((tile, COORD_PAD), lambda r: (r, 0))),
        compiler_params=pltpu.CompilerParams(dimension_semantics=("parallel",)),
        cost_estimate=mlp_cost,
    )(hx, w1f, b1r, w2p, b2p)

    # ---- Stage 2 operands ----------------------------------------------------
    conf_pad = jnp.zeros((n_pad, COORD_PAD), f32).at[:N, :3].set(
        conformer.astype(f32))
    batch_i = batch.astype(jnp.int32)
    batch_pad = jnp.concatenate(
        [batch_i, jnp.full((pad,), num_graphs, jnp.int32)])

    conf_T = conf_pad.T                      # (8, n_pad) compact column slab
    chat_T = chat_pad.T                      # (8, n_pad)
    gid_r = batch_pad.reshape(n_pad, 1)
    gid_c = batch_pad.reshape(1, n_pad)

    # per-tile graph-id ranges for the cross-graph tile skip (scalar prefetch)
    btile = batch_pad.reshape(nt, tile)
    tmin = btile.min(axis=1).astype(jnp.int32)
    tmax = btile.max(axis=1).astype(jnp.int32)

    dist_cost = pl.CostEstimate(
        flops=nt * nt * (4 * tile * tile * COORD_PAD + 16 * tile * tile),
        transcendentals=2 * nt * nt * tile * tile,
        bytes_accessed=nt * nt * 4 * (4 * COORD_PAD * tile + 2 * tile)
                       + nt * 8 * 128 * 4)

    partials = pl.pallas_call(
        functools.partial(_dist_loss_kernel, num_graphs),
        out_shape=jax.ShapeDtypeStruct((nt, 8, 128), f32),
        grid_spec=pltpu.PrefetchScalarGridSpec(
            num_scalar_prefetch=2,
            grid=(nt, nt),
            in_specs=[
                pl.BlockSpec((tile, COORD_PAD), lambda ri, ci, *_: (ri, 0)),  # conf rows
                pl.BlockSpec((tile, COORD_PAD), lambda ri, ci, *_: (ri, 0)),  # chat rows
                pl.BlockSpec((COORD_PAD, tile), lambda ri, ci, *_: (0, ci)),  # conf cols^T
                pl.BlockSpec((COORD_PAD, tile), lambda ri, ci, *_: (0, ci)),  # chat cols^T
                pl.BlockSpec((tile, 1), lambda ri, ci, *_: (ri, 0)),          # graph id rows
                pl.BlockSpec((1, tile), lambda ri, ci, *_: (0, ci)),          # graph id cols
            ],
            out_specs=pl.BlockSpec((1, 8, 128), lambda ri, ci, *_: (ri, 0, 0))),
        compiler_params=pltpu.CompilerParams(
            dimension_semantics=("parallel", "arbitrary")),
        cost_estimate=dist_cost,
    )(tmin, tmax, conf_pad, chat_pad, conf_T, chat_T, gid_r, gid_c)

    # ---- O(N) epilogue in plain JAX (kept out of the hot kernel) -------------
    counts = jax.ops.segment_sum(jnp.ones((N,), f32), batch_i,
                                 num_segments=num_graphs)
    m_sum = jnp.sum(counts * counts)          # analytic sum(mask) = sum n_g^2
    mae = jnp.sum(partials[:, 0, 0]) / m_sum
    mse = jnp.sum(partials[:, 0, 1]) / m_sum

    chat = chat_pad[:N, :3]
    delta = conformer.astype(f32) - chat
    rn2 = jnp.sum(delta * delta, axis=1)
    per_graph = jax.ops.segment_sum(rn2, batch_i, num_segments=num_graphs)
    rmsd = jnp.mean(jnp.sqrt(per_graph / counts))

    return {
        "loss": mae,
        "cdist_mae": mae,
        "cdist_mse": mse,
        "coord_rmsd": rmsd,
        "conformer": conformer,
        "conformer_hat": chat,
    }


# --------------------------------------------------------------------------
# Pure-JAX reference (mirrors the PyTorch forward) for verification
# --------------------------------------------------------------------------
def _reference(conformer, hidden_X, batch, params, num_graphs):
    w1, b1, w2, b2 = params
    h = jnp.maximum(hidden_X @ w1 + b1, 0.0)
    chat = h @ w2 + b2

    def cdist(x):
        d2 = jnp.sum((x[:, None, :] - x[None, :, :]) ** 2, axis=-1)
        return jnp.sqrt(jnp.maximum(d2, 0.0))

    d, dh = cdist(conformer), cdist(chat)
    m = (batch[:, None] == batch[None, :]).astype(jnp.float32)
    msum = m.sum()
    mae = jnp.sum(jnp.abs(d * m - dh * m)) / msum
    mse = jnp.sum((d * m - dh * m) ** 2) / msum
    rn2 = jnp.sum((conformer - chat) ** 2, axis=-1)
    rmsds = []
    for g in range(num_graphs):
        sel = (batch == g).astype(jnp.float32)
        rmsds.append(jnp.sqrt(jnp.sum(rn2 * sel) / jnp.sum(sel)))
    rmsd = jnp.mean(jnp.stack(rmsds))
    return chat, mae, mse, rmsd


if __name__ == "__main__":
    key = jax.random.PRNGKey(0)
    # small stand-in shapes (real module: hidden_X_dim=300)
    H, G = 64, 4
    sizes = [70, 90, 60, 80]                       # nodes per graph
    N = sum(sizes)                                 # 300 nodes
    H3 = 3 * H
    k1, k2, k3, k4, k5, k6 = jax.random.split(key, 6)

    hidden_X = jax.random.normal(k1, (N, H), jnp.float32)
    conformer = jax.random.normal(k2, (N, 3), jnp.float32)
    batch = jnp.concatenate(
        [jnp.full((s,), g, jnp.int32) for g, s in enumerate(sizes)])

    # PyTorch-Linear-like uniform fan-in init
    s1 = 1.0 / np.sqrt(H)
    s2 = 1.0 / np.sqrt(H3)
    w1 = jax.random.uniform(k3, (H, H3), jnp.float32, -s1, s1)
    b1 = jax.random.uniform(k4, (H3,), jnp.float32, -s1, s1)
    w2 = jax.random.uniform(k5, (H3, 3), jnp.float32, -s2, s2)
    b2 = jax.random.uniform(k6, (3,), jnp.float32, -s2, s2)
    params = (w1, b1, w2, b2)

    # tile=128 -> n_pad=384, 3x3 tile grid: exercises accumulation, symmetry
    # weighting and the cross-graph tile skip.
    out = gnn_conformer_prediction_head(conformer, hidden_X, batch, params, G,
                                        tile=128)
    out = jax.block_until_ready(out)

    chat_ref, mae_ref, mse_ref, rmsd_ref = _reference(
        conformer, hidden_X, batch, params, G)
    np.testing.assert_allclose(np.asarray(out["conformer_hat"]),
                               np.asarray(chat_ref), rtol=1e-4, atol=1e-4)
    np.testing.assert_allclose(float(out["cdist_mae"]), float(mae_ref),
                               rtol=2e-3, atol=1e-3)
    np.testing.assert_allclose(float(out["cdist_mse"]), float(mse_ref),
                               rtol=2e-3, atol=1e-3)
    np.testing.assert_allclose(float(out["coord_rmsd"]), float(rmsd_ref),
                               rtol=2e-3, atol=1e-3)

    print("KERNEL_OK")
</pallas_src>

<mosaic_0001>
module attributes {stable_mosaic.version = 11 : i64} {
  func.func @_mlp_head_kernel(%arg0: i32, %arg1: memref<128x64xf32, #tpu.memory_space<vmem>>, %arg2: memref<64x192xf32, #tpu.memory_space<vmem>>, %arg3: memref<1x192xf32, #tpu.memory_space<vmem>>, %arg4: memref<192x8xf32, #tpu.memory_space<vmem>>, %arg5: memref<1x8xf32, #tpu.memory_space<vmem>>, %arg6: memref<128x8xf32, #tpu.memory_space<vmem>>) attributes {dimension_semantics = [#tpu.dimension_semantics<parallel>], iteration_bounds = array<i64: 3>, scalar_prefetch = 0 : i64, scratch_operands = 0 : i64, tpu.core_type = #tpu.core_type<tc>, window_params = [{transform_indices = @transform_0, window_bounds = array<i64: 128, 64>}, {pipeline_mode = #tpu.pipeline_mode<synchronous>, transform_indices = @transform_1, window_bounds = array<i64: 64, 192>}, {pipeline_mode = #tpu.pipeline_mode<synchronous>, transform_indices = @transform_2, window_bounds = array<i64: 1, 192>}, {pipeline_mode = #tpu.pipeline_mode<synchronous>, transform_indices = @transform_3, window_bounds = array<i64: 192, 8>}, {pipeline_mode = #tpu.pipeline_mode<synchronous>, transform_indices = @transform_4, window_bounds = array<i64: 1, 8>}, {transform_indices = @transform_5, window_bounds = array<i64: 128, 8>}]} {
    %c0 = arith.constant 0 : index
    %c0_0 = arith.constant 0 : index
    %0 = vector.load %arg1[%c0, %c0_0] : memref<128x64xf32, #tpu.memory_space<vmem>>, vector<128x64xf32>
    %c0_1 = arith.constant 0 : index
    %c0_2 = arith.constant 0 : index
    %1 = vector.load %arg2[%c0_1, %c0_2] : memref<64x192xf32, #tpu.memory_space<vmem>>, vector<64x192xf32>
    %cst = arith.constant dense<0.000000e+00> : vector<128x192xf32>
    %2 = tpu.matmul %0, %1, %cst {dimension_numbers = #tpu.dot_dimension_numbers<[1], [0], [0], [1], [0, 0, 1, 1], [], []>} : vector<128x64xf32>, vector<64x192xf32>, vector<128x192xf32> -> vector<128x192xf32>
    %c0_3 = arith.constant 0 : index
    %c0_4 = arith.constant 0 : index
    %3 = vector.load %arg3[%c0_3, %c0_4] : memref<1x192xf32, #tpu.memory_space<vmem>>, vector<1x192xf32>
    %4 = vector.broadcast %3 : vector<1x192xf32> to vector<128x192xf32>
    %5 = arith.addf %2, %4 : vector<128x192xf32>
    %cst_5 = arith.constant 0.000000e+00 : f32
    %6 = vector.broadcast %cst_5 : f32 to vector<128x192xf32>
    %7 = arith.maximumf %5, %6 : vector<128x192xf32>
    %c0_6 = arith.constant 0 : index
    %c0_7 = arith.constant 0 : index
    %8 = vector.load %arg4[%c0_6, %c0_7] : memref<192x8xf32, #tpu.memory_space<vmem>>, vector<192x8xf32>
    %cst_8 = arith.constant dense<0.000000e+00> : vector<128x8xf32>
    %9 = tpu.matmul %7, %8, %cst_8 {dimension_numbers = #tpu.dot_dimension_numbers<[1], [0], [0], [1], [0, 0, 1, 1], [], []>} : vector<128x192xf32>, vector<192x8xf32>, vector<128x8xf32> -> vector<128x8xf32>
    %c0_9 = arith.constant 0 : index
    %c0_10 = arith.constant 0 : index
    %10 = vector.load %arg5[%c0_9, %c0_10] : memref<1x8xf32, #tpu.memory_space<vmem>>, vector<1x8xf32>
    %11 = vector.broadcast %10 : vector<1x8xf32> to vector<128x8xf32>
    %12 = arith.addf %9, %11 : vector<128x8xf32>
    %c128_i32 = arith.constant 128 : i32
    %13 = arith.muli %arg0, %c128_i32 : i32
    %14 = tpu.iota {dimensions = array<i32: 0>} : vector<128x8xi32>
    %15 = vector.broadcast %13 : i32 to vector<128x8xi32>
    %16 = arith.addi %15, %14 : vector<128x8xi32>
    %c300_i32 = arith.constant 300 : i32
    %17 = vector.broadcast %c300_i32 : i32 to vector<128x8xi32>
    %18 = arith.cmpi slt, %16, %17 : vector<128x8xi32>
    %cst_11 = arith.constant 0.000000e+00 : f32
    %19 = vector.broadcast %cst_11 : f32 to vector<128x8xf32>
    %20 = arith.select %18, %12, %19 : vector<128x8xi1>, vector<128x8xf32>
    %c0_12 = arith.constant 0 : index
    %c0_13 = arith.constant 0 : index
    %21 = vector.load %arg6[%c0_12, %c0_13] : memref<128x8xf32, #tpu.memory_space<vmem>>, vector<128x8xf32>
    tpu.vector_store %arg6[%c0_12, %c0_13], %20 {strides = array<i32>} : memref<128x8xf32, #tpu.memory_space<vmem>>, vector<128x8xf32>,
    return
  }
  func.func @transform_0(%arg0: i32) -> (i32, i32) {
    %c0_i32 = arith.constant 0 : i32
    %c0_i32_0 = arith.constant 0 : i32
    return %arg0, %c0_i32 : i32, i32
  }
  func.func @transform_1(%arg0: i32) -> (i32, i32) {
    %c0_i32 = arith.constant 0 : i32
    %c0_i32_0 = arith.constant 0 : i32
    %c0_i32_1 = arith.constant 0 : i32
    return %c0_i32, %c0_i32_0 : i32, i32
  }
  func.func @transform_2(%arg0: i32) -> (i32, i32) {
    %c0_i32 = arith.constant 0 : i32
    %c0_i32_0 = arith.constant 0 : i32
    %c0_i32_1 = arith.constant 0 : i32
    return %c0_i32, %c0_i32_0 : i32, i32
  }
  func.func @transform_3(%arg0: i32) -> (i32, i32) {
    %c0_i32 = arith.constant 0 : i32
    %c0_i32_0 = arith.constant 0 : i32
    %c0_i32_1 = arith.constant 0 : i32
    return %c0_i32, %c0_i32_0 : i32, i32
  }
  func.func @transform_4(%arg0: i32) -> (i32, i32) {
    %c0_i32 = arith.constant 0 : i32
    %c0_i32_0 = arith.constant 0 : i32
    %c0_i32_1 = arith.constant 0 : i32
    return %c0_i32, %c0_i32_0 : i32, i32
  }
  func.func @transform_5(%arg0: i32) -> (i32, i32) {
    %c0_i32 = arith.constant 0 : i32
    %c0_i32_0 = arith.constant 0 : i32
    return %arg0, %c0_i32 : i32, i32
  }
}

</mosaic_0001>

<llo_original>
// kernel: tpu_custom_call.1
$region0: #{tpu_custom_call.1}
  #allocation0 [shape = 'u32[]', space=smem, size = 0x4, offset = 0x4, fixed_abs, tag = 'smem constant byte address 0x4 - core index']
  #allocation1 [shape = 'u32[144,128]{1,0:T(1,128)}', space=vmem, size = 0x12000, scoped, tag = 'internal scratch']
  %s0 = inlined_call_operand.vmem [shape: f32[384,64], index: 0, kind: input, shape index: {}]
  %s1 = inlined_call_operand.vmem [shape: f32[64,192], index: 1, kind: input, shape index: {}]
  %s2 = inlined_call_operand.vmem [shape: f32[1,192], index: 2, kind: input, shape index: {}]
  %s3 = inlined_call_operand.vmem [shape: f32[192,8], index: 3, kind: input, shape index: {}]
  %s4 = inlined_call_operand.vmem [shape: f32[1,8], index: 4, kind: input, shape index: {}]
  %s5 = inlined_call_operand.vmem [shape: f32[384,8], index: 5, kind: output, shape index: {}]
  %s6 = sld [smem:[#allocation0]]
  $region53: #{tpu_custom_call.1} parent=0
    _
  %s8 = ssub.s32 1, %s6
  %s9 = scalar_select 0, %s8, %s6
  loop: start=0, step=1, limit=5
  $region2: #{tpu_custom_call.1} parent=0 // loop_pre_header
    _
  $region3: #{tpu_custom_call.1} parent=0 // loop_header
    %s11 = sphi 0, %s15
    %p12 = scmp.ge.s32.totalorder %s11, 5
    %s21 = sphi 0, %s23
    %s24 = sphi 0, %s21
    %s25 = sphi 0, %s24
    %s41 = sphi 0, %s25
    %s45 = sphi 0, %s45
    %s47 = sphi 0, %s45
    %s48 = sphi 0, %s47
    %s62 = sphi 0, %s48
    %s66 = sphi 0, %s66
    %s68 = sphi 0, %s66
    %s69 = sphi 0, %s68
    %s83 = sphi 0, %s69
    %s87 = sphi 0, %s87
    %s89 = sphi 0, %s87
    %s90 = sphi 0, %s89
    %s104 = sphi 0, %s90
    %s108 = sphi 0, %s108
    %s110 = sphi 0, %s108
    %s111 = sphi 0, %s110
    %s125 = sphi 0, %s111
    %s131 = sphi 0, %s133
    %s134 = sphi 0, %s131
    %s135 = sphi 0, %s134
    %s151 = sphi 0, %s135
  $region4: #{tpu_custom_call.1} parent=0 // loop_header_branch
    %14 = sbr.rel (%p12) target = $region8
  $region5: #{tpu_custom_call.1} parent=0 // loop_body
    %s16 = ssub.s32 %s11, 1
    %s17 = ssub.s32 %s11, 2
    %s18 = sadd.s32 %s11, 1
    %s19 = ssub.s32 %s11, %s18
    %p20 = scmp.eq.s32.totalorder %s19, 0
    %s22 = sadd.s32 %s21, 1
    %s23 = scalar_select %p20, %s21, %s22
    %p26 = pneg %p20
    %p27 = scmp.eq.s32.totalorder %s11, 2
    %p28 = por %p26, %p27
    %p29 = scmp.ne.s32.totalorder %s21, %s24
    %p30 = scmp.eq.s32.totalorder %s11, 0
    %p31 = por %p29, %p30
    %p32 = scmp.ne.s32.totalorder %s21, %s24
    %p33 = scmp.eq.s32.totalorder %s16, 2
    %p34 = por %p32, %p33
    %p35 = scmp.ne.s32.totalorder %s24, %s25
    %p36 = scmp.eq.s32.totalorder %s16, 0
    %p37 = por %p35, %p36
    %p38 = scmp.ne.s32.totalorder %s24, %s25
    %p39 = scmp.eq.s32.totalorder %s17, 2
    %p40 = por %p38, %p39
    %p42 = scmp.ne.s32.totalorder %s25, %s41
    %p43 = scmp.eq.s32.totalorder %s17, 0
    %p44 = por %p42, %p43
    %s46 = sadd.s32 %s45, 1
    %p49 = scmp.eq.s32.totalorder %s11, 2
    %p50 = scmp.ne.s32.totalorder %s45, %s47
    %p51 = scmp.eq.s32.totalorder %s11, 0
    %p52 = por %p50, %p51
    %p53 = scmp.ne.s32.totalorder %s45, %s47
    %p54 = scmp.eq.s32.totalorder %s16, 2
    %p55 = por %p53, %p54
    %p56 = scmp.ne.s32.totalorder %s47, %s48
    %p57 = scmp.eq.s32.totalorder %s16, 0
    %p58 = por %p56, %p57
    %p59 = scmp.ne.s32.totalorder %s47, %s48
    %p60 = scmp.eq.s32.totalorder %s17, 2
    %p61 = por %p59, %p60
    %p63 = scmp.ne.s32.totalorder %s48, %s62
    %p64 = scmp.eq.s32.totalorder %s17, 0
    %p65 = por %p63, %p64
    %s67 = sadd.s32 %s66, 1
    %p70 = scmp.eq.s32.totalorder %s11, 2
    %p71 = scmp.ne.s32.totalorder %s66, %s68
    %p72 = scmp.eq.s32.totalorder %s11, 0
    %p73 = por %p71, %p72
    %p74 = scmp.ne.s32.totalorder %s66, %s68
    %p75 = scmp.eq.s32.totalorder %s16, 2
    %p76 = por %p74, %p75
    %p77 = scmp.ne.s32.totalorder %s68, %s69
    %p78 = scmp.eq.s32.totalorder %s16, 0
    %p79 = por %p77, %p78
    %p80 = scmp.ne.s32.totalorder %s68, %s69
    %p81 = scmp.eq.s32.totalorder %s17, 2
    %p82 = por %p80, %p81
    %p84 = scmp.ne.s32.totalorder %s69, %s83
    %p85 = scmp.eq.s32.totalorder %s17, 0
    %p86 = por %p84, %p85
    %s88 = sadd.s32 %s87, 1
    %p91 = scmp.eq.s32.totalorder %s11, 2
    %p92 = scmp.ne.s32.totalorder %s87, %s89
    %p93 = scmp.eq.s32.totalorder %s11, 0
    %p94 = por %p92, %p93
    %p95 = scmp.ne.s32.totalorder %s87, %s89
    %p96 = scmp.eq.s32.totalorder %s16, 2
    %p97 = por %p95, %p96
    %p98 = scmp.ne.s32.totalorder %s89, %s90
    %p99 = scmp.eq.s32.totalorder %s16, 0
    %p100 = por %p98, %p99
    %p101 = scmp.ne.s32.totalorder %s89, %s90
    %p102 = scmp.eq.s32.totalorder %s17, 2
    %p103 = por %p101, %p102
    %p105 = scmp.ne.s32.totalorder %s90, %s104
    %p106 = scmp.eq.s32.totalorder %s17, 0
    %p107 = por %p105, %p106
    %s109 = sadd.s32 %s108, 1
    %p112 = scmp.eq.s32.totalorder %s11, 2
    %p113 = scmp.ne.s32.totalorder %s108, %s110
    %p114 = scmp.eq.s32.totalorder %s11, 0
    %p115 = por %p113, %p114
    %p116 = scmp.ne.s32.totalorder %s108, %s110
    %p117 = scmp.eq.s32.totalorder %s16, 2
    %p118 = por %p116, %p117
    %p119 = scmp.ne.s32.totalorder %s110, %s111
    %p120 = scmp.eq.s32.totalorder %s16, 0
    %p121 = por %p119, %p120
    %p122 = scmp.ne.s32.totalorder %s110, %s111
    %p123 = scmp.eq.s32.totalorder %s17, 2
    %p124 = por %p122, %p123
    %p126 = scmp.ne.s32.totalorder %s111, %s125
    %p127 = scmp.eq.s32.totalorder %s17, 0
    %p128 = por %p126, %p127
    %s129 = ssub.s32 %s11, %s18
    %p130 = scmp.eq.s32.totalorder %s129, 0
    %s132 = sadd.s32 %s131, 1
    %s133 = scalar_select %p130, %s131, %s132
    %p136 = pneg %p130
    %p137 = scmp.eq.s32.totalorder %s11, 2
    %p138 = por %p136, %p137
    %p139 = scmp.ne.s32.totalorder %s131, %s134
    %p140 = scmp.eq.s32.totalorder %s11, 0
    %p141 = por %p139, %p140
    %p142 = scmp.ne.s32.totalorder %s131, %s134
    %p143 = scmp.eq.s32.totalorder %s16, 2
    %p144 = por %p142, %p143
    %p145 = scmp.ne.s32.totalorder %s134, %s135
    %p146 = scmp.eq.s32.totalorder %s16, 0
    %p147 = por %p145, %p146
    %p148 = scmp.ne.s32.totalorder %s134, %s135
    %p149 = scmp.eq.s32.totalorder %s17, 2
    %p150 = por %p148, %p149
    %p152 = scmp.ne.s32.totalorder %s135, %s151
    %p153 = scmp.eq.s32.totalorder %s17, 0
    %p154 = por %p152, %p153
    %p155 = scmp.le.s32.totalorder 1, %s11
    %p156 = scmp.lt.s32.totalorder %s11, 4
    %p157 = pnand %p155, %p156
    %p158 = pneg %p157
    // Predicated region
    $region9: #{tpu_custom_call.1} parent=5 // pred_check
      _
    $region10: #{tpu_custom_call.1} parent=5 // pred_check_branch
      %160 = sbr.rel (%p157) target = $region12
    $region11: #{tpu_custom_call.1} parent=5 // pred_region
      %s161 = ssub.s32 %s11, 1
      // Predicated region
      $region13: #{tpu_custom_call.1} parent=11 // pred_check
        %p162 = pneg %p58
      $region14: #{tpu_custom_call.1} parent=11 // pred_check_branch
        %164 = sbr.rel (%p162) target = $region16
      $region15: #{tpu_custom_call.1} parent=11 // pred_region
        _
      $region16: #{tpu_custom_call.1} parent=11 // pred_fallthru
        _
      // Predicated region
      $region17: #{tpu_custom_call.1} parent=11 // pred_check
        %p165 = pneg %p79
      $region18: #{tpu_custom_call.1} parent=11 // pred_check_branch
        %167 = sbr.rel (%p165) target = $region20
      $region19: #{tpu_custom_call.1} parent=11 // pred_region
        _
      $region20: #{tpu_custom_call.1} parent=11 // pred_fallthru
        _
      // Predicated region
      $region21: #{tpu_custom_call.1} parent=11 // pred_check
        %p168 = pneg %p100
      $region22: #{tpu_custom_call.1} parent=11 // pred_check_branch
        %170 = sbr.rel (%p168) target = $region24
      $region23: #{tpu_custom_call.1} parent=11 // pred_region
        _
      $region24: #{tpu_custom_call.1} parent=11 // pred_fallthru
        _
      // Predicated region
      $region25: #{tpu_custom_call.1} parent=11 // pred_check
        %p171 = pneg %p121
      $region26: #{tpu_custom_call.1} parent=11 // pred_check_branch
        %173 = sbr.rel (%p171) target = $region28
      $region27: #{tpu_custom_call.1} parent=11 // pred_region
        _
      $region28: #{tpu_custom_call.1} parent=11 // pred_fallthru
        _
    $region12: #{tpu_custom_call.1} parent=5 // pred_fallthru
      _
    %p174 = scmp.lt.s32.totalorder %s11, 3
    // Predicated region
    $region29: #{tpu_custom_call.1} parent=5 // pred_check
      %p175 = pneg %p174
    $region30: #{tpu_custom_call.1} parent=5 // pred_check_branch
      %177 = sbr.rel (%p175) target = $region32
    $region31: #{tpu_custom_call.1} parent=5 // pred_region
      // Predicated region
      $region33: #{tpu_custom_call.1} parent=31 // pred_check
        %p178 = pneg %p31
      $region34: #{tpu_custom_call.1} parent=31 // pred_check_branch
        %180 = sbr.rel (%p178) target = $region36
      $region35: #{tpu_custom_call.1} parent=31 // pred_region
        %s181 = smul.u32 16, %s11
        %p182 = scmp.lt.s32.totalorder %s181, 47
        %s183 = scalar_select %p182, %s181, 47
        %s184 = smul.addr %s183, 8
        %s185 = scalar_lea.vmem %s0, %s184
        %s186 = smul.u32 16, %s11
      $region36: #{tpu_custom_call.1} parent=31 // pred_fallthru
        _
    $region32: #{tpu_custom_call.1} parent=5 // pred_fallthru
      _
    %p187 = scmp.le.s32.totalorder 1, %s11
    %p188 = scmp.lt.s32.totalorder %s11, 4
    %p189 = pnand %p187, %p188
    %p190 = pneg %p189
    // Predicated region
    $region37: #{tpu_custom_call.1} parent=5 // pred_check
      _
    $region38: #{tpu_custom_call.1} parent=5 // pred_check_branch
      %192 = sbr.rel (%p189) target = $region40
    $region39: #{tpu_custom_call.1} parent=5 // pred_region
      %s193 = ssub.s32 %s11, 1
      %s194 = smul.u32 16, %s16
      %p195 = scmp.lt.s32.totalorder %s194, 47
      %s196 = scalar_select %p195, %s194, 47
      %s197 = smul.addr %s196, 8
      %s198 = scalar_lea.vmem %s0, %s197
      %p199 = pneg %p37
      %p200 = pneg %p34
      %p201 = pneg %p58
      %p202 = pneg %p55
      %p203 = pneg %p79
      %p204 = pneg %p76
      %p205 = pneg %p100
      %p206 = pneg %p97
      %p207 = pneg %p121
      %p208 = pneg %p118
      %p209 = pneg %p147
      %p210 = pneg %p144
      %s211 = smul.u32 16, %s16
      %p212 = scmp.lt.s32.totalorder %s211, 47
      %s213 = scalar_select %p212, %s211, 47
      %s214 = smul.addr %s213, 8
      %s215 = scalar_lea.vmem %s5, %s214
      %s216 = smul.u32 16, %s16
      %p217 = scmp.lt.s32.totalorder %s216, 47
      %s218 = scalar_select %p217, %s216, 47
      %s219 = smul.addr %s218, 8
      %s220 = scalar_lea.vmem %s0, %s219
      %s221 = smul.u32 16, %s16
      %s222 = smul.u32 16, %s16
      %p223 = scmp.lt.s32.totalorder %s222, 47
      %s224 = scalar_select %p223, %s222, 47
      %s225 = smul.addr %s224, 8
      %s226 = scalar_lea.vmem %s5, %s225
      %s227 = smul.u32 16, %s16
      %v228 = vld [vmem:[%s220] sm:$0xff]
      %v229 = vld [vmem:[%s220 + $0x8] sm:$0xff]
      %v230 = vld [vmem:[%s220 + $0x10] sm:$0xff]
      %v231 = vld [vmem:[%s220 + $0x18] sm:$0xff]
      %v232 = vld [vmem:[%s220 + $0x20] sm:$0xff]
      %v233 = vld [vmem:[%s220 + $0x28] sm:$0xff]
      %v234 = vld [vmem:[%s220 + $0x30] sm:$0xff]
      %v235 = vld [vmem:[%s220 + $0x38] sm:$0xff]
      %v236 = vld [vmem:[%s220 + $0x40] sm:$0xff]
      %v237 = vld [vmem:[%s220 + $0x48] sm:$0xff]
      %v238 = vld [vmem:[%s220 + $0x50] sm:$0xff]
      %v239 = vld [vmem:[%s220 + $0x58] sm:$0xff]
      %v240 = vld [vmem:[%s220 + $0x60] sm:$0xff]
      %v241 = vld [vmem:[%s220 + $0x68] sm:$0xff]
      %v242 = vld [vmem:[%s220 + $0x70] sm:$0xff]
      %v243 = vld [vmem:[%s220 + $0x78] sm:$0xff]
      %v244 = vld [vmem:[%s1] sm:$0xff]
      %v245 = vld [vmem:[%s1 + $0x8] sm:$0xff]
      %v246 = vld [vmem:[%s1 + $0x10] sm:$0xff]
      %v247 = vld [vmem:[%s1 + $0x18] sm:$0xff]
      %v248 = vld [vmem:[%s1 + $0x20] sm:$0xff]
      %v249 = vld [vmem:[%s1 + $0x28] sm:$0xff]
      %v250 = vld [vmem:[%s1 + $0x30] sm:$0xff]
      %v251 = vld [vmem:[%s1 + $0x38] sm:$0xff]
      %v252 = vld [vmem:[%s1 + $0x40] sm:$0xff]
      %v253 = vld [vmem:[%s1 + $0x48] sm:$0xff]
      %v254 = vld [vmem:[%s1 + $0x50] sm:$0xff]
      %v255 = vld [vmem:[%s1 + $0x58] sm:$0xff]
      %v256 = vld [vmem:[%s1 + $0x60] sm:$0xff]
      %v257 = vld [vmem:[%s1 + $0x68] sm:$0xff]
      %v258 = vld [vmem:[%s1 + $0x70] sm:$0xff]
      %v259 = vld [vmem:[%s1 + $0x78] sm:$0xff]
      %v260 = vld [vmem:[%s2] sm:$0x3]
      %v262 = vlaneseq
      %v263 = vshrl.u32 %v262, 7
      %v264 = vsub.s32 0, %v263
      %v265 = vrot.slane %v260, %v264
      %v266 = vlaneseq
      %v267 = vshrl.u32 %v266, 7
      %v268 = vsub.s32 1, %v267
      %v269 = vrot.slane %v260, %v268
      %vm272 = vcmask 523264
      %v274 = vsel %vm272, %v228, 0
      %v277 = vsel %vm272, %v229, 0
      %v280 = vsel %vm272, %v230, 0
      %v283 = vsel %vm272, %v231, 0
      %v286 = vsel %vm272, %v232, 0
      %v289 = vsel %vm272, %v233, 0
      %v292 = vsel %vm272, %v234, 0
      %v295 = vsel %vm272, %v235, 0
      %v298 = vsel %vm272, %v236, 0
      %v301 = vsel %vm272, %v237, 0
      %v304 = vsel %vm272, %v238, 0
      %v307 = vsel %vm272, %v239, 0
      %v310 = vsel %vm272, %v240, 0
      %v313 = vsel %vm272, %v241, 0
      %v316 = vsel %vm272, %v242, 0
      %v319 = vsel %vm272, %v243, 0
      %321 = vmatprep.subr.mxu0 %v245
      %322 = vmatpush1.msra.mxu0 %v244
      %323 = vmatprep.subr.mxu0 %v247
      %324 = vmatpush1.msra.mxu0 %v246
      %325 = vmatprep.subr.mxu0 %v249
      %326 = vmatpush1.msra.mxu0 %v248
      %327 = vmatprep.subr.mxu0 %v251
      %328 = vmatpush1.msra.mxu0 %v250
      %329 = vmatprep.subr.mxu0 %v253
      %330 = vmatpush1.msra.mxu0 %v252
      %331 = vmatprep.subr.mxu0 %v255
      %332 = vmatpush1.msra.mxu0 %v254
      %333 = vmatprep.subr.mxu0 %v257
      %334 = vmatpush1.msra.mxu0 %v256
      %335 = vmatprep.subr.mxu0 %v259
      %336 = vmatpush1.msra.mxu0 %v258
      %337 = vmatprep.subr.mxu0 0.0
      %338 = vmatpush1.msra.mxu0 0.0
      %339 = vmatprep.subr.mxu0 0.0
      %340 = vmatpush1.msra.mxu0 0.0
      %341 = vmatprep.subr.mxu0 0.0
      %342 = vmatpush1.msra.mxu0 0.0
      %343 = vmatprep.subr.mxu0 0.0
      %344 = vmatpush1.msra.mxu0 0.0
      %345 = vmatprep.subr.mxu0 0.0
      %346 = vmatpush1.msra.mxu0 0.0
      %347 = vmatprep.subr.mxu0 0.0
      %348 = vmatpush1.msra.mxu0 0.0
      %349 = vmatprep.subr.mxu0 0.0
      %350 = vmatpush1.msra.mxu0 0.0
      %351 = vmatprep.subr.mxu0 0.0
      %352 = vmatpush1.msra.mxu0 0.0
      %353 = vmatprep.subr.mxu0 0.0
      %354 = vmatpush1.msra.mxu0 0.0
      %355 = vmatprep.subr.mxu0 0.0
      %356 = vmatpush1.msra.mxu0 0.0
      %357 = vmatprep.subr.mxu0 0.0
      %358 = vmatpush1.msra.mxu0 0.0
      %359 = vmatprep.subr.mxu0 0.0
      %360 = vmatpush1.msra.mxu0 0.0
      %361 = vmatprep.subr.mxu0 0.0
      %362 = vmatpush1.msra.mxu0 0.0
      %363 = vmatprep.subr.mxu0 0.0
      %364 = vmatpush1.msra.mxu0 0.0
      %365 = vmatprep.subr.mxu0 0.0
      %366 = vmatpush1.msra.mxu0 0.0
      %367 = vmatprep.subr.mxu0 0.0
      %368 = vmatpush1.msra.mxu0 0.0
      %369 = vmatprep.subr.mxu0 0.0
      %370 = vmatpush1.msra.mxu0 0.0
      %371 = vmatprep.subr.mxu0 0.0
      %372 = vmatpush1.msra.mxu0 0.0
      %373 = vmatprep.subr.mxu0 0.0
      %374 = vmatpush1.msra.mxu0 0.0
      %375 = vmatprep.subr.mxu0 0.0
      %376 = vmatpush1.msra.mxu0 0.0
      %377 = vmatprep.subr.mxu0 0.0
      %378 = vmatpush1.msra.mxu0 0.0
      %379 = vmatprep.subr.mxu0 0.0
      %380 = vmatpush1.msra.mxu0 0.0
      %381 = vmatprep.subr.mxu0 0.0
      %382 = vmatpush1.msra.mxu0 0.0
      %383 = vmatprep.subr.mxu0 0.0
      %384 = vmatpush1.msra.mxu0 0.0
      %385 = vmatprep.mubr.f32.mxu0 0.0
      %386 = vmatmul.mubr.f32.gmra.mrb[0].mxu0 %v274
      %v387 = vpop.f32.mrb[0].mxu0
      %v388 = vadd.f32 %v265, %v387
      %v389 = vpop.f32.mrb[0].mxu0
      %v390 = vadd.f32 %v269, %v389
      %391 = vmatprep.mubr.f32.mxu0 0.0
      %392 = vmatmul.mubr.f32.gmra.mrb[0].mxu0 %v277
      %v393 = vpop.f32.mrb[0].mxu0
      %v394 = vadd.f32 %v265, %v393
      %v395 = vpop.f32.mrb[0].mxu0
      %v396 = vadd.f32 %v269, %v395
      %397 = vmatprep.mubr.f32.mxu0 0.0
      %398 = vmatmul.mubr.f32.gmra.mrb[0].mxu0 %v280
      %v399 = vpop.f32.mrb[0].mxu0
      %v400 = vadd.f32 %v265, %v399
      %v401 = vpop.f32.mrb[0].mxu0
      %v402 = vadd.f32 %v269, %v401
      %403 = vmatprep.mubr.f32.mxu0 0.0
      %404 = vmatmul.mubr.f32.gmra.mrb[0].mxu0 %v283
      %v405 = vpop.f32.mrb[0].mxu0
      %v406 = vadd.f32 %v265, %v405
      %v407 = vpop.f32.mrb[0].mxu0
      %v408 = vadd.f32 %v269, %v407
      %409 = vmatprep.mubr.f32.mxu0 0.0
      %410 = vmatmul.mubr.f32.gmra.mrb[0].mxu0 %v286
      %v411 = vpop.f32.mrb[0].mxu0
      %v412 = vadd.f32 %v265, %v411
      %v413 = vpop.f32.mrb[0].mxu0
      %v414 = vadd.f32 %v269, %v413
      %415 = vmatprep.mubr.f32.mxu0 0.0
      %416 = vmatmul.mubr.f32.gmra.mrb[0].mxu0 %v289
      %v417 = vpop.f32.mrb[0].mxu0
      %v418 = vadd.f32 %v265, %v417
      %v419 = vpop.f32.mrb[0].mxu0
      %v420 = vadd.f32 %v269, %v419
      %421 = vmatprep.mubr.f32.mxu0 0.0
      %422 = vmatmul.mubr.f32.gmra.mrb[0].mxu0 %v292
      %v423 = vpop.f32.mrb[0].mxu0
      %v424 = vadd.f32 %v265, %v423
      %v425 = vpop.f32.mrb[0].mxu0
      %v426 = vadd.f32 %v269, %v425
      %427 = vmatprep.mubr.f32.mxu0 0.0
      %428 = vmatmul.mubr.f32.gmra.mrb[0].mxu0 %v295
      %v429 = vpop.f32.mrb[0].mxu0
      %v430 = vadd.f32 %v265, %v429
      %v431 = vpop.f32.mrb[0].mxu0
      %v432 = vadd.f32 %v269, %v431
      %433 = vmatprep.mubr.f32.mxu0 0.0
      %434 = vmatmul.mubr.f32.gmra.mrb[0].mxu0 %v298
      %v435 = vpop.f32.mrb[0].mxu0
      %v436 = vadd.f32 %v265, %v435
      %v437 = vpop.f32.mrb[0].mxu0
      %v438 = vadd.f32 %v269, %v437
      %439 = vmatprep.mubr.f32.mxu0 0.0
      %440 = vmatmul.mubr.f32.gmra.mrb[0].mxu0 %v301
      %v441 = vpop.f32.mrb[0].mxu0
      %v442 = vadd.f32 %v265, %v441
      %v443 = vpop.f32.mrb[0].mxu0
      %v444 = vadd.f32 %v269, %v443
      %445 = vmatprep.mubr.f32.mxu0 0.0
      %446 = vmatmul.mubr.f32.gmra.mrb[0].mxu0 %v304
      %v447 = vpop.f32.mrb[0].mxu0
      %v448 = vadd.f32 %v265, %v447
      %v449 = vpop.f32.mrb[0].mxu0
      %v450 = vadd.f32 %v269, %v449
      %451 = vmatprep.mubr.f32.mxu0 0.0
      %452 = vmatmul.mubr.f32.gmra.mrb[0].mxu0 %v307
      %v453 = vpop.f32.mrb[0].mxu0
      %v454 = vadd.f32 %v265, %v453
      %v455 = vpop.f32.mrb[0].mxu0
      %v456 = vadd.f32 %v269, %v455
      %457 = vmatprep.mubr.f32.mxu0 0.0
      %458 = vmatmul.mubr.f32.gmra.mrb[0].mxu0 %v310
      %v459 = vpop.f32.mrb[0].mxu0
      %v460 = vadd.f32 %v265, %v459
      %v461 = vpop.f32.mrb[0].mxu0
      %v462 = vadd.f32 %v269, %v461
      %463 = vmatprep.mubr.f32.mxu0 0.0
      %464 = vmatmul.mubr.f32.gmra.mrb[0].mxu0 %v313
      %v465 = vpop.f32.mrb[0].mxu0
      %v466 = vadd.f32 %v265, %v465
      %v467 = vpop.f32.mrb[0].mxu0
      %v468 = vadd.f32 %v269, %v467
      %469 = vmatprep.mubr.f32.mxu0 0.0
      %470 = vmatmul.mubr.f32.gmra.mrb[0].mxu0 %v316
      %v471 = vpop.f32.mrb[0].mxu0
      %v472 = vadd.f32 %v265, %v471
      %v473 = vpop.f32.mrb[0].mxu0
      %v474 = vadd.f32 %v269, %v473
      %475 = vmatprep.mubr.f32.mxu0 0.0
      %476 = vmatmul.mubr.f32.gmra.mrb[0].mxu0 %v319
      %v477 = vpop.f32.mrb[0].mxu0
      %v478 = vadd.f32 %v265, %v477
      %v479 = vpop.f32.mrb[0].mxu0
      %v480 = vadd.f32 %v269, %v479
      %481 = vdwg.mxu0
      %v482 = vmax.f32 %v388, 0.0
      %v483 = vmax.f32 %v390, 0.0
      %v484 = vmax.f32 %v394, 0.0
      %v485 = vmax.f32 %v396, 0.0
      %v486 = vmax.f32 %v400, 0.0
      %v487 = vmax.f32 %v402, 0.0
      %v488 = vmax.f32 %v406, 0.0
      %v489 = vmax.f32 %v408, 0.0
      %v490 = vmax.f32 %v412, 0.0
      %v491 = vmax.f32 %v414, 0.0
      %v492 = vmax.f32 %v418, 0.0
      %v493 = vmax.f32 %v420, 0.0
      %v494 = vmax.f32 %v424, 0.0
      %v495 = vmax.f32 %v426, 0.0
      %v496 = vmax.f32 %v430, 0.0
      %v497 = vmax.f32 %v432, 0.0
      %v498 = vmax.f32 %v436, 0.0
      %v499 = vmax.f32 %v438, 0.0
      %v500 = vmax.f32 %v442, 0.0
      %v501 = vmax.f32 %v444, 0.0
      %v502 = vmax.f32 %v448, 0.0
      %v503 = vmax.f32 %v450, 0.0
      %v504 = vmax.f32 %v454, 0.0
      %v505 = vmax.f32 %v456, 0.0
      %v506 = vmax.f32 %v460, 0.0
      %v507 = vmax.f32 %v462, 0.0
      %v508 = vmax.f32 %v466, 0.0
      %v509 = vmax.f32 %v468, 0.0
      %v510 = vmax.f32 %v472, 0.0
      %v511 = vmax.f32 %v474, 0.0
      %v512 = vmax.f32 %v478, 0.0
      %v513 = vmax.f32 %v480, 0.0
      %v514 = vld [vmem:[%s3] sm:$0xff]
      %v515 = vld [vmem:[%s3 + $0x8] sm:$0xff]
      %v516 = vld [vmem:[%s3 + $0x10] sm:$0xff]
      %v517 = vld [vmem:[%s3 + $0x18] sm:$0xff]
      %v518 = vld [vmem:[%s3 + $0x20] sm:$0xff]
      %v519 = vld [vmem:[%s3 + $0x28] sm:$0xff]
      %v520 = vld [vmem:[%s3 + $0x30] sm:$0xff]
      %v521 = vld [vmem:[%s3 + $0x38] sm:$0xff]
      %v522 = vld [vmem:[%s3 + $0x40] sm:$0xff]
      %v523 = vld [vmem:[%s3 + $0x48] sm:$0xff]
      %v524 = vld [vmem:[%s3 + $0x50] sm:$0xff]
      %v525 = vld [vmem:[%s3 + $0x58] sm:$0xff]
      %v526 = vld [vmem:[%s3 + $0x60] sm:$0xff]
      %v527 = vld [vmem:[%s3 + $0x68] sm:$0xff]
      %v528 = vld [vmem:[%s3 + $0x70] sm:$0xff]
      %v529 = vld [vmem:[%s3 + $0x78] sm:$0xff]
      %v530 = vld [vmem:[%s3 + $0x80] sm:$0xff]
      %v531 = vld [vmem:[%s3 + $0x88] sm:$0xff]
      %v532 = vld [vmem:[%s3 + $0x90] sm:$0xff]
      %v533 = vld [vmem:[%s3 + $0x98] sm:$0xff]
      %v534 = vld [vmem:[%s3 + $0xa0] sm:$0xff]
      %v535 = vld [vmem:[%s3 + $0xa8] sm:$0xff]
      %v536 = vld [vmem:[%s3 + $0xb0] sm:$0xff]
      %v537 = vld [vmem:[%s3 + $0xb8] sm:$0xff]
      %v538 = vld [vmem:[%s4] sm:$0x1]
      %v540 = vlaneseq
      %v541 = vshrl.u32 %v540, 7
      %v542 = vsub.s32 0, %v541
      %v543 = vrot.slane %v538, %v542
      %v546 = vsel %vm272, %v483, 0
      %v549 = vsel %vm272, %v485, 0
      %v552 = vsel %vm272, %v487, 0
      %v555 = vsel %vm272, %v489, 0
      %v558 = vsel %vm272, %v491, 0
      %v561 = vsel %vm272, %v493, 0
      %v564 = vsel %vm272, %v495, 0
      %v567 = vsel %vm272, %v497, 0
      %v570 = vsel %vm272, %v499, 0
      %v573 = vsel %vm272, %v501, 0
      %v576 = vsel %vm272, %v503, 0
      %v579 = vsel %vm272, %v505, 0
      %v582 = vsel %vm272, %v507, 0
      %v585 = vsel %vm272, %v509, 0
      %v588 = vsel %vm272, %v511, 0
      %v591 = vsel %vm272, %v513, 0
      %593 = vmatprep.subr.mxu0 0.0
      %594 = vmatpush1.msra.mxu0 %v514
      %595 = vmatprep.subr.mxu0 0.0
      %596 = vmatpush1.msra.mxu0 %v515
      %597 = vmatprep.subr.mxu0 0.0
      %598 = vmatpush1.msra.mxu0 %v516
      %599 = vmatprep.subr.mxu0 0.0
      %600 = vmatpush1.msra.mxu0 %v517
      %601 = vmatprep.subr.mxu0 0.0
      %602 = vmatpush1.msra.mxu0 %v518
      %603 = vmatprep.subr.mxu0 0.0
      %604 = vmatpush1.msra.mxu0 %v519
      %605 = vmatprep.subr.mxu0 0.0
      %606 = vmatpush1.msra.mxu0 %v520
      %607 = vmatprep.subr.mxu0 0.0
      %608 = vmatpush1.msra.mxu0 %v521
      %609 = vmatprep.subr.mxu0 0.0
      %610 = vmatpush1.msra.mxu0 %v522
      %611 = vmatprep.subr.mxu0 0.0
      %612 = vmatpush1.msra.mxu0 %v523
      %613 = vmatprep.subr.mxu0 0.0
      %614 = vmatpush1.msra.mxu0 %v524
      %615 = vmatprep.subr.mxu0 0.0
      %616 = vmatpush1.msra.mxu0 %v525
      %617 = vmatprep.subr.mxu0 0.0
      %618 = vmatpush1.msra.mxu0 %v526
      %619 = vmatprep.subr.mxu0 0.0
      %620 = vmatpush1.msra.mxu0 %v527
      %621 = vmatprep.subr.mxu0 0.0
      %622 = vmatpush1.msra.mxu0 %v528
      %623 = vmatprep.subr.mxu0 0.0
      %624 = vmatpush1.msra.mxu0 %v529
      %625 = vmatprep.subr.mxu0 0.0
      %626 = vmatpush1.msra.mxu0 %v530
      %627 = vmatprep.subr.mxu0 0.0
      %628 = vmatpush1.msra.mxu0 %v531
      %629 = vmatprep.subr.mxu0 0.0
      %630 = vmatpush1.msra.mxu0 %v532
      %631 = vmatprep.subr.mxu0 0.0
      %632 = vmatpush1.msra.mxu0 %v533
      %633 = vmatprep.subr.mxu0 0.0
      %634 = vmatpush1.msra.mxu0 %v534
      %635 = vmatprep.subr.mxu0 0.0
      %636 = vmatpush1.msra.mxu0 %v535
      %637 = vmatprep.subr.mxu0 0.0
      %638 = vmatpush1.msra.mxu0 %v536
      %639 = vmatprep.subr.mxu0 0.0
      %640 = vmatpush1.msra.mxu0 %v537
      %641 = vmatprep.subr.mxu0 0.0
      %642 = vmatpush1.msra.mxu0 0.0
      %643 = vmatprep.subr.mxu0 0.0
      %644 = vmatpush1.msra.mxu0 0.0
      %645 = vmatprep.subr.mxu0 0.0
      %646 = vmatpush1.msra.mxu0 0.0
      %647 = vmatprep.subr.mxu0 0.0
      %648 = vmatpush1.msra.mxu0 0.0
      %649 = vmatprep.subr.mxu0 0.0
      %650 = vmatpush1.msra.mxu0 0.0
      %651 = vmatprep.subr.mxu0 0.0
      %652 = vmatpush1.msra.mxu0 0.0
      %653 = vmatprep.subr.mxu0 0.0
      %654 = vmatpush1.msra.mxu0 0.0
      %655 = vmatprep.subr.mxu0 0.0
      %656 = vmatpush1.msra.mxu0 0.0
      %657 = vmatprep.mubr.f32.mxu0 %v546
      %658 = vmatmul.mubr.f32.gmra.mrb[0].mxu0 %v482
      %v659 = vpop.f32.mrb[0].mxu0
      %v660 = vadd.f32 %v543, %v659
      %v661 = vpop.f32.mrb[0].mxu0
      %662 = vmatprep.mubr.f32.mxu0 %v549
      %663 = vmatmul.mubr.f32.gmra.mrb[0].mxu0 %v484
      %v664 = vpop.f32.mrb[0].mxu0
      %v665 = vadd.f32 %v543, %v664
      %v666 = vpop.f32.mrb[0].mxu0
      %667 = vmatprep.mubr.f32.mxu0 %v552
      %668 = vmatmul.mubr.f32.gmra.mrb[0].mxu0 %v486
      %v669 = vpop.f32.mrb[0].mxu0
      %v670 = vadd.f32 %v543, %v669
      %v671 = vpop.f32.mrb[0].mxu0
      %672 = vmatprep.mubr.f32.mxu0 %v555
      %673 = vmatmul.mubr.f32.gmra.mrb[0].mxu0 %v488
      %v674 = vpop.f32.mrb[0].mxu0
      %v675 = vadd.f32 %v543, %v674
      %v676 = vpop.f32.mrb[0].mxu0
      %677 = vmatprep.mubr.f32.mxu0 %v558
      %678 = vmatmul.mubr.f32.gmra.mrb[0].mxu0 %v490
      %v679 = vpop.f32.mrb[0].mxu0
      %v680 = vadd.f32 %v543, %v679
      %v681 = vpop.f32.mrb[0].mxu0
      %682 = vmatprep.mubr.f32.mxu0 %v561
      %683 = vmatmul.mubr.f32.gmra.mrb[0].mxu0 %v492
      %v684 = vpop.f32.mrb[0].mxu0
      %v685 = vadd.f32 %v543, %v684
      %v686 = vpop.f32.mrb[0].mxu0
      %687 = vmatprep.mubr.f32.mxu0 %v564
      %688 = vmatmul.mubr.f32.gmra.mrb[0].mxu0 %v494
      %v689 = vpop.f32.mrb[0].mxu0
      %v690 = vadd.f32 %v543, %v689
      %v691 = vpop.f32.mrb[0].mxu0
      %692 = vmatprep.mubr.f32.mxu0 %v567
      %693 = vmatmul.mubr.f32.gmra.mrb[0].mxu0 %v496
      %v694 = vpop.f32.mrb[0].mxu0
      %v695 = vadd.f32 %v543, %v694
      %v696 = vpop.f32.mrb[0].mxu0
      %697 = vmatprep.mubr.f32.mxu0 %v570
      %698 = vmatmul.mubr.f32.gmra.mrb[0].mxu0 %v498
      %v699 = vpop.f32.mrb[0].mxu0
      %v700 = vadd.f32 %v543, %v699
      %v701 = vpop.f32.mrb[0].mxu0
      %702 = vmatprep.mubr.f32.mxu0 %v573
      %703 = vmatmul.mubr.f32.gmra.mrb[0].mxu0 %v500
      %v704 = vpop.f32.mrb[0].mxu0
      %v705 = vadd.f32 %v543, %v704
      %v706 = vpop.f32.mrb[0].mxu0
      %707 = vmatprep.mubr.f32.mxu0 %v576
      %708 = vmatmul.mubr.f32.gmra.mrb[0].mxu0 %v502
      %v709 = vpop.f32.mrb[0].mxu0
      %v710 = vadd.f32 %v543, %v709
      %v711 = vpop.f32.mrb[0].mxu0
      %712 = vmatprep.mubr.f32.mxu0 %v579
      %713 = vmatmul.mubr.f32.gmra.mrb[0].mxu0 %v504
      %v714 = vpop.f32.mrb[0].mxu0
      %v715 = vadd.f32 %v543, %v714
      %v716 = vpop.f32.mrb[0].mxu0
      %717 = vmatprep.mubr.f32.mxu0 %v582
      %718 = vmatmul.mubr.f32.gmra.mrb[0].mxu0 %v506
      %v719 = vpop.f32.mrb[0].mxu0
      %v720 = vadd.f32 %v543, %v719
      %v721 = vpop.f32.mrb[0].mxu0
      %722 = vmatprep.mubr.f32.mxu0 %v585
      %723 = vmatmul.mubr.f32.gmra.mrb[0].mxu0 %v508
      %v724 = vpop.f32.mrb[0].mxu0
      %v725 = vadd.f32 %v543, %v724
      %v726 = vpop.f32.mrb[0].mxu0
      %727 = vmatprep.mubr.f32.mxu0 %v588
      %728 = vmatmul.mubr.f32.gmra.mrb[0].mxu0 %v510
      %v729 = vpop.f32.mrb[0].mxu0
      %v730 = vadd.f32 %v543, %v729
      %v731 = vpop.f32.mrb[0].mxu0
      %732 = vmatprep.mubr.f32.mxu0 %v591
      %733 = vmatmul.mubr.f32.gmra.mrb[0].mxu0 %v512
      %v734 = vpop.f32.mrb[0].mxu0
      %v735 = vadd.f32 %v543, %v734
      %v736 = vpop.f32.mrb[0].mxu0
      %737 = vdwg.mxu0
      %s738 = smul.u32 %s16, 128
      %v739 = vlaneseq
      %v740 = vshrl.u32 %v739, 7
      %v741 = vadd.s32 %v740, 8
      %v742 = vadd.s32 %v740, 16
      %v743 = vadd.s32 %v740, 24
      %v744 = vadd.s32 %v740, 32
      %v745 = vadd.s32 %v740, 40
      %v746 = vadd.s32 %v740, 48
      %v747 = vadd.s32 %v740, 56
      %v748 = vadd.s32 %v740, 64
      %v749 = vadd.s32 %v740, 72
      %v750 = vadd.s32 %v740, 80
      %v751 = vadd.s32 %v740, 88
      %v752 = vadd.s32 %v740, 96
      %v753 = vadd.s32 %v740, 104
      %v754 = vadd.s32 %v740, 112
      %v755 = vadd.s32 %v740, 120
      %v756 = vstv %s738
      %v757 = vadd.s32 %v756, %v740
      %v758 = vadd.s32 %v756, %v741
      %v759 = vadd.s32 %v756, %v742
      %v760 = vadd.s32 %v756, %v743
      %v761 = vadd.s32 %v756, %v744
      %v762 = vadd.s32 %v756, %v745
      %v763 = vadd.s32 %v756, %v746
      %v764 = vadd.s32 %v756, %v747
      %v765 = vadd.s32 %v756, %v748
      %v766 = vadd.s32 %v756, %v749
      %v767 = vadd.s32 %v756, %v750
      %v768 = vadd.s32 %v756, %v751
      %v769 = vadd.s32 %v756, %v752
      %v770 = vadd.s32 %v756, %v753
      %v771 = vadd.s32 %v756, %v754
      %v772 = vadd.s32 %v756, %v755
      %vm773 = vcmp.lt.s32.totalorder %v757, 300
      %vm774 = vcmp.lt.s32.totalorder %v758, 300
      %vm775 = vcmp.lt.s32.totalorder %v759, 300
      %vm776 = vcmp.lt.s32.totalorder %v760, 300
      %vm777 = vcmp.lt.s32.totalorder %v761, 300
      %vm778 = vcmp.lt.s32.totalorder %v762, 300
      %vm779 = vcmp.lt.s32.totalorder %v763, 300
      %vm780 = vcmp.lt.s32.totalorder %v764, 300
      %vm781 = vcmp.lt.s32.totalorder %v765, 300
      %vm782 = vcmp.lt.s32.totalorder %v766, 300
      %vm783 = vcmp.lt.s32.totalorder %v767, 300
      %vm784 = vcmp.lt.s32.totalorder %v768, 300
      %vm785 = vcmp.lt.s32.totalorder %v769, 300
      %vm786 = vcmp.lt.s32.totalorder %v770, 300
      %vm787 = vcmp.lt.s32.totalorder %v771, 300
      %vm788 = vcmp.lt.s32.totalorder %v772, 300
      %v789 = vsel %vm773, %v660, 0.0
      %v790 = vsel %vm774, %v665, 0.0
      %v791 = vsel %vm775, %v670, 0.0
      %v792 = vsel %vm776, %v675, 0.0
      %v793 = vsel %vm777, %v680, 0.0
      %v794 = vsel %vm778, %v685, 0.0
      %v795 = vsel %vm779, %v690, 0.0
      %v796 = vsel %vm780, %v695, 0.0
      %v797 = vsel %vm781, %v700, 0.0
      %v798 = vsel %vm782, %v705, 0.0
      %v799 = vsel %vm783, %v710, 0.0
      %v800 = vsel %vm784, %v715, 0.0
      %v801 = vsel %vm785, %v720, 0.0
      %v802 = vsel %vm786, %v725, 0.0
      %v803 = vsel %vm787, %v730, 0.0
      %v804 = vsel %vm788, %v735, 0.0
      %vm805 = vcmask 64512
      %806 = vst.msk [vmem:[%s226] sm:$0xff] %vm805, %v789
      %807 = vst.msk [vmem:[%s226 + $0x8] sm:$0xff] %vm805, %v790
      %808 = vst.msk [vmem:[%s226 + $0x10] sm:$0xff] %vm805, %v791
      %809 = vst.msk [vmem:[%s226 + $0x18] sm:$0xff] %vm805, %v792
      %810 = vst.msk [vmem:[%s226 + $0x20] sm:$0xff] %vm805, %v793
      %811 = vst.msk [vmem:[%s226 + $0x28] sm:$0xff] %vm805, %v794
      %812 = vst.msk [vmem:[%s226 + $0x30] sm:$0xff] %vm805, %v795
      %813 = vst.msk [vmem:[%s226 + $0x38] sm:$0xff] %vm805, %v796
      %814 = vst.msk [vmem:[%s226 + $0x40] sm:$0xff] %vm805, %v797
      %815 = vst.msk [vmem:[%s226 + $0x48] sm:$0xff] %vm805, %v798
      %816 = vst.msk [vmem:[%s226 + $0x50] sm:$0xff] %vm805, %v799
      %817 = vst.msk [vmem:[%s226 + $0x58] sm:$0xff] %vm805, %v800
      %818 = vst.msk [vmem:[%s226 + $0x60] sm:$0xff] %vm805, %v801
      %819 = vst.msk [vmem:[%s226 + $0x68] sm:$0xff] %vm805, %v802
      %820 = vst.msk [vmem:[%s226 + $0x70] sm:$0xff] %vm805, %v803
      %821 = vst.msk [vmem:[%s226 + $0x78] sm:$0xff] %vm805, %v804
      %s822 = smul.u32 16, %s16
      %p823 = scmp.lt.s32.totalorder %s822, 47
      %s824 = scalar_select %p823, %s822, 47
      %s825 = smul.addr %s824, 8
      %s826 = scalar_lea.vmem %s5, %s825
      // Predicated region
      $region41: #{tpu_custom_call.1} parent=39 // pred_check
        %p827 = pneg %p144
      $region42: #{tpu_custom_call.1} parent=39 // pred_check_branch
        %829 = sbr.rel (%p827) target = $region44
      $region43: #{tpu_custom_call.1} parent=39 // pred_region
        %s830 = smul.u32 16, %s16
      $region44: #{tpu_custom_call.1} parent=39 // pred_fallthru
        _
    $region40: #{tpu_custom_call.1} parent=5 // pred_fallthru
      _
    %p831 = scmp.le.s32.totalorder 2, %s11
    // Predicated region
    $region45: #{tpu_custom_call.1} parent=5 // pred_check
      %p832 = pneg %p831
    $region46: #{tpu_custom_call.1} parent=5 // pred_check_branch
      %834 = sbr.rel (%p832) target = $region48
    $region47: #{tpu_custom_call.1} parent=5 // pred_region
      %s835 = ssub.s32 %s11, 2
      // Predicated region
      $region49: #{tpu_custom_call.1} parent=47 // pred_check
        %p836 = pneg %p150
      $region50: #{tpu_custom_call.1} parent=47 // pred_check_branch
        %838 = sbr.rel (%p836) target = $region52
      $region51: #{tpu_custom_call.1} parent=47 // pred_region
        %s839 = smul.u32 16, %s17
        %p840 = scmp.lt.s32.totalorder %s839, 47
        %s841 = scalar_select %p840, %s839, 47
        %s842 = smul.addr %s841, 8
        %s843 = scalar_lea.vmem %s5, %s842
      $region52: #{tpu_custom_call.1} parent=47 // pred_fallthru
        _
    $region48: #{tpu_custom_call.1} parent=5 // pred_fallthru
      _
  $region6: #{tpu_custom_call.1} parent=0 // loop_footer
    %s15 = sadd.s32 1, %s11
  $region7: #{tpu_custom_call.1} parent=0 // loop_footer_branch
    %10 = sbr.rel target = $region3
  $region8: #{tpu_custom_call.1} parent=0 // loop_exit
    _

</llo_original>
